<compile_context>
chip_gen: v7x
topology: tpu7x:2x2x1
jax: 0.10.0
libtpu: 0.0.40
codegen_flags: <defaults>
</compile_context>

<pallas_src>
import math

import jax
import jax.numpy as jnp
from jax import lax
from jax.experimental import pallas as pl
from jax.experimental.pallas import tpu as pltpu


def _mhsa_kernel(num_heads, head_dim, inv_scale, mxu_dtype):
    D = num_heads * head_dim

    def kernel(x_ref, w_ref, b_ref, ctx_ref, attn_ref):
        x = x_ref[...]                       # (S, D)
        w = w_ref[...]                       # (D, 3D)   grid-invariant, VMEM resident
        b = b_ref[...]                       # (1, 3D)

        # Fused QKV projection: one lane-dense MXU matmul, f32 accumulation.
        qkv = jnp.dot(x, w, preferred_element_type=jnp.float32) + b   # (S, 3D)

        ctx_cols = []
        for h in range(num_heads):           # H is small & static -> unrolled
            lo = h * head_dim
            q = qkv[:, lo:lo + head_dim] * inv_scale        # scale folded into q
            k = qkv[:, D + lo:D + lo + head_dim]            # (S, hd)
            v = qkv[:, 2 * D + lo:2 * D + lo + head_dim]    # (S, hd)

            if mxu_dtype is not None:
                q = q.astype(mxu_dtype)
                k = k.astype(mxu_dtype)
                v = v.astype(mxu_dtype)

            # q @ k^T without materializing a transposed copy of k.
            s = lax.dot_general(q, k, (((1,), (1,)), ((), ())),
                                preferred_element_type=jnp.float32)   # (S, S)

            # Numerically stable softmax in f32; normalize via reciprocal-multiply.
            s = s - jnp.max(s, axis=-1, keepdims=True)
            p = jnp.exp(s)
            denom = jnp.sum(p, axis=-1, keepdims=True)
            attn = p * (1.0 / denom)                                  # (S, S)
            attn_ref[h] = attn                                        # full-tile store

            p_in = attn.astype(mxu_dtype) if mxu_dtype is not None else attn
            ctx_cols.append(
                jnp.dot(p_in, v, preferred_element_type=jnp.float32))  # (S, hd)

        # Heads concatenated along the lane dim -> single lane-dense (S, D) store,
        # already in the torch (B, S, D) output layout (no wrapper transpose pass).
        ctx_ref[...] = jnp.concatenate(ctx_cols, axis=-1)

    return kernel


def multi_head_self_attention(x, params, num_heads, mxu_dtype=None):
    """x: (B, S, D) float32.  params: Wq/Wk/Wv (D, D) ("x @ W" oriented), bq/bk/bv (D,).

    Returns (out (B, S, D), attention (B, H, S, S)) matching the torch module.
    Set mxu_dtype=jnp.bfloat16 on v6e/v7x for ~2x MXU throughput at real ViT sizes
    (keeps f32 accumulation / f32 softmax math).
    """
    B, S, D = x.shape
    hd = D // num_heads
    inv_scale = 1.0 / math.sqrt(float(hd))

    # Fuse projection weights/biases once in the wrapper: (D, 3D) and (1, 3D).
    w_qkv = jnp.concatenate([params["Wq"], params["Wk"], params["Wv"]], axis=1)
    b_qkv = jnp.concatenate(
        [params["bq"], params["bk"], params["bv"]]).reshape(1, 3 * D)

    x_spec = pl.BlockSpec((None, S, D), lambda b: (b, 0, 0))
    w_spec = pl.BlockSpec((D, 3 * D), lambda b: (0, 0))      # constant index -> resident
    b_spec = pl.BlockSpec((1, 3 * D), lambda b: (0, 0))
    ctx_spec = pl.BlockSpec((None, S, D), lambda b: (b, 0, 0))
    attn_spec = pl.BlockSpec((None, num_heads, S, S), lambda b: (b, 0, 0, 0))

    ctx, attn = pl.pallas_call(
        _mhsa_kernel(num_heads, hd, inv_scale, mxu_dtype),
        out_shape=(
            jax.ShapeDtypeStruct((B, S, D), jnp.float32),
            jax.ShapeDtypeStruct((B, num_heads, S, S), jnp.float32),
        ),
        grid_spec=pltpu.PrefetchScalarGridSpec(
            num_scalar_prefetch=0,
            grid=(B,),
            in_specs=[x_spec, w_spec, b_spec],
            out_specs=[ctx_spec, attn_spec],
        ),
        compiler_params=pltpu.CompilerParams(
            dimension_semantics=("parallel",)),
    )(x, w_qkv, b_qkv)

    return ctx, attn


def _reference(x, params, num_heads):
    B, S, D = x.shape
    hd = D // num_heads
    q = x @ params["Wq"] + params["bq"]
    k = x @ params["Wk"] + params["bk"]
    v = x @ params["Wv"] + params["bv"]
    q = q.reshape(B, S, num_heads, hd).transpose(0, 2, 1, 3)
    k = k.reshape(B, S, num_heads, hd).transpose(0, 2, 3, 1)
    v = v.reshape(B, S, num_heads, hd).transpose(0, 2, 1, 3)
    attn = jax.nn.softmax(q @ k / math.sqrt(hd), axis=-1)
    out = (attn @ v).transpose(0, 2, 1, 3).reshape(B, S, D)
    return out, attn


if __name__ == "__main__":
    # Small ViT-ish shapes: batch=2, seq=8 tokens (cls + patches), latent=32, 4 heads.
    B, S, D, H = 2, 8, 32, 4
    key = jax.random.PRNGKey(0)
    kx, kq, kk, kv, kbq, kbk, kbv = jax.random.split(key, 7)

    x = jax.random.normal(kx, (B, S, D), dtype=jnp.float32)
    params = {
        "Wq": jax.random.normal(kq, (D, D), dtype=jnp.float32) * 0.1,
        "Wk": jax.random.normal(kk, (D, D), dtype=jnp.float32) * 0.1,
        "Wv": jax.random.normal(kv, (D, D), dtype=jnp.float32) * 0.1,
        "bq": jax.random.normal(kbq, (D,), dtype=jnp.float32) * 0.1,
        "bk": jax.random.normal(kbk, (D,), dtype=jnp.float32) * 0.1,
        "bv": jax.random.normal(kbv, (D,), dtype=jnp.float32) * 0.1,
    }

    out, attn = multi_head_self_attention(x, params, H)   # f32 MXU: exact check below
    out = jax.block_until_ready(out)
    attn = jax.block_until_ready(attn)

    ref_out, ref_attn = _reference(x, params, H)
    assert jnp.allclose(out, ref_out, atol=1e-4, rtol=1e-4)
    assert jnp.allclose(attn, ref_attn, atol=1e-4, rtol=1e-4)

    print("KERNEL_OK")
</pallas_src>

<mosaic_0001>
module attributes {stable_mosaic.version = 11 : i64} {
  func.func @kernel(%arg0: i32, %arg1: memref<1x8x32xf32, #tpu.memory_space<vmem>>, %arg2: memref<32x96xf32, #tpu.memory_space<vmem>>, %arg3: memref<1x96xf32, #tpu.memory_space<vmem>>, %arg4: memref<1x8x32xf32, #tpu.memory_space<vmem>>, %arg5: memref<1x4x8x8xf32, #tpu.memory_space<vmem>>) attributes {dimension_semantics = [#tpu.dimension_semantics<parallel>], iteration_bounds = array<i64: 2>, scalar_prefetch = 0 : i64, scratch_operands = 0 : i64, tpu.core_type = #tpu.core_type<tc>, window_params = [{transform_indices = @transform_0, window_bounds = array<i64: 1, 8, 32>}, {pipeline_mode = #tpu.pipeline_mode<synchronous>, transform_indices = @transform_1, window_bounds = array<i64: 32, 96>}, {pipeline_mode = #tpu.pipeline_mode<synchronous>, transform_indices = @transform_2, window_bounds = array<i64: 1, 96>}, {transform_indices = @transform_3, window_bounds = array<i64: 1, 8, 32>}, {transform_indices = @transform_4, window_bounds = array<i64: 1, 4, 8, 8>}]} {
    %c0 = arith.constant 0 : index
    %c0_0 = arith.constant 0 : index
    %c0_1 = arith.constant 0 : index
    %0 = vector.load %arg1[%c0, %c0_0, %c0_1] : memref<1x8x32xf32, #tpu.memory_space<vmem>>, vector<1x8x32xf32>
    %1 = vector.shape_cast %0 : vector<1x8x32xf32> to vector<8x32xf32>
    %c0_2 = arith.constant 0 : index
    %c0_3 = arith.constant 0 : index
    %2 = vector.load %arg2[%c0_2, %c0_3] : memref<32x96xf32, #tpu.memory_space<vmem>>, vector<32x96xf32>
    %c0_4 = arith.constant 0 : index
    %c0_5 = arith.constant 0 : index
    %3 = vector.load %arg3[%c0_4, %c0_5] : memref<1x96xf32, #tpu.memory_space<vmem>>, vector<1x96xf32>
    %cst = arith.constant dense<0.000000e+00> : vector<8x96xf32>
    %4 = tpu.matmul %1, %2, %cst {dimension_numbers = #tpu.dot_dimension_numbers<[1], [0], [0], [1], [0, 0, 1, 1], [], []>} : vector<8x32xf32>, vector<32x96xf32>, vector<8x96xf32> -> vector<8x96xf32>
    %5 = vector.broadcast %3 : vector<1x96xf32> to vector<8x96xf32>
    %6 = arith.addf %4, %5 : vector<8x96xf32>
    %7 = vector.extract_strided_slice %6 {offsets = [0, 0], sizes = [8, 8], strides = [1, 1]} : vector<8x96xf32> to vector<8x8xf32>
    %cst_6 = arith.constant 0.353553385 : f32
    %8 = vector.broadcast %cst_6 : f32 to vector<8x8xf32>
    %9 = arith.mulf %7, %8 : vector<8x8xf32>
    %10 = vector.extract_strided_slice %6 {offsets = [0, 32], sizes = [8, 8], strides = [1, 1]} : vector<8x96xf32> to vector<8x8xf32>
    %11 = vector.extract_strided_slice %6 {offsets = [0, 64], sizes = [8, 8], strides = [1, 1]} : vector<8x96xf32> to vector<8x8xf32>
    %cst_7 = arith.constant dense<0.000000e+00> : vector<8x8xf32>
    %12 = tpu.matmul %9, %10, %cst_7 {dimension_numbers = #tpu.dot_dimension_numbers<[1], [1], [0], [0], [0, 0, 1, 0], [], []>} : vector<8x8xf32>, vector<8x8xf32>, vector<8x8xf32> -> vector<8x8xf32>
    %cst_8 = arith.constant dense<0xFF800000> : vector<8xf32>
    %13 = vector.multi_reduction <maximumf>, %12, %cst_8 [1] : vector<8x8xf32> to vector<8xf32>
    %14 = vector.shape_cast %13 : vector<8xf32> to vector<8x1xf32>
    %15 = vector.broadcast %14 : vector<8x1xf32> to vector<8x8xf32>
    %16 = arith.subf %12, %15 : vector<8x8xf32>
    %17 = math.exp %16 : vector<8x8xf32>
    %cst_9 = arith.constant dense<0.000000e+00> : vector<8xf32>
    %18 = vector.multi_reduction <add>, %17, %cst_9 [1] : vector<8x8xf32> to vector<8xf32>
    %19 = vector.shape_cast %18 : vector<8xf32> to vector<8x1xf32>
    %cst_10 = arith.constant 1.000000e+00 : f32
    %20 = vector.broadcast %cst_10 : f32 to vector<8x1xf32>
    %21 = arith.divf %20, %19 : vector<8x1xf32>
    %22 = vector.broadcast %21 : vector<8x1xf32> to vector<8x8xf32>
    %23 = arith.mulf %17, %22 : vector<8x8xf32>
    %c0_11 = arith.constant 0 : index
    %c0_12 = arith.constant 0 : index
    %c0_13 = arith.constant 0 : index
    %c0_14 = arith.constant 0 : index
    %24 = vector.load %arg5[%c0_11, %c0_12, %c0_13, %c0_14] : memref<1x4x8x8xf32, #tpu.memory_space<vmem>>, vector<1x1x8x8xf32>
    %25 = vector.shape_cast %24 : vector<1x1x8x8xf32> to vector<8x8xf32>
    %26 = vector.shape_cast %23 : vector<8x8xf32> to vector<1x1x8x8xf32>
    tpu.vector_store %arg5[%c0_11, %c0_12, %c0_13, %c0_14], %26 {strides = array<i32>} : memref<1x4x8x8xf32, #tpu.memory_space<vmem>>, vector<1x1x8x8xf32>,
    %cst_15 = arith.constant dense<0.000000e+00> : vector<8x8xf32>
    %27 = tpu.matmul %23, %11, %cst_15 {dimension_numbers = #tpu.dot_dimension_numbers<[1], [0], [0], [1], [0, 0, 1, 1], [], []>} : vector<8x8xf32>, vector<8x8xf32>, vector<8x8xf32> -> vector<8x8xf32>
    %28 = vector.extract_strided_slice %6 {offsets = [0, 8], sizes = [8, 8], strides = [1, 1]} : vector<8x96xf32> to vector<8x8xf32>
    %cst_16 = arith.constant 0.353553385 : f32
    %29 = vector.broadcast %cst_16 : f32 to vector<8x8xf32>
    %30 = arith.mulf %28, %29 : vector<8x8xf32>
    %31 = vector.extract_strided_slice %6 {offsets = [0, 40], sizes = [8, 8], strides = [1, 1]} : vector<8x96xf32> to vector<8x8xf32>
    %32 = vector.extract_strided_slice %6 {offsets = [0, 72], sizes = [8, 8], strides = [1, 1]} : vector<8x96xf32> to vector<8x8xf32>
    %cst_17 = arith.constant dense<0.000000e+00> : vector<8x8xf32>
    %33 = tpu.matmul %30, %31, %cst_17 {dimension_numbers = #tpu.dot_dimension_numbers<[1], [1], [0], [0], [0, 0, 1, 0], [], []>} : vector<8x8xf32>, vector<8x8xf32>, vector<8x8xf32> -> vector<8x8xf32>
    %cst_18 = arith.constant dense<0xFF800000> : vector<8xf32>
    %34 = vector.multi_reduction <maximumf>, %33, %cst_18 [1] : vector<8x8xf32> to vector<8xf32>
    %35 = vector.shape_cast %34 : vector<8xf32> to vector<8x1xf32>
    %36 = vector.broadcast %35 : vector<8x1xf32> to vector<8x8xf32>
    %37 = arith.subf %33, %36 : vector<8x8xf32>
    %38 = math.exp %37 : vector<8x8xf32>
    %cst_19 = arith.constant dense<0.000000e+00> : vector<8xf32>
    %39 = vector.multi_reduction <add>, %38, %cst_19 [1] : vector<8x8xf32> to vector<8xf32>
    %40 = vector.shape_cast %39 : vector<8xf32> to vector<8x1xf32>
    %cst_20 = arith.constant 1.000000e+00 : f32
    %41 = vector.broadcast %cst_20 : f32 to vector<8x1xf32>
    %42 = arith.divf %41, %40 : vector<8x1xf32>
    %43 = vector.broadcast %42 : vector<8x1xf32> to vector<8x8xf32>
    %44 = arith.mulf %38, %43 : vector<8x8xf32>
    %c0_21 = arith.constant 0 : index
    %c1 = arith.constant 1 : index
    %c0_22 = arith.constant 0 : index
    %c0_23 = arith.constant 0 : index
    %45 = vector.load %arg5[%c0_21, %c1, %c0_22, %c0_23] : memref<1x4x8x8xf32, #tpu.memory_space<vmem>>, vector<1x1x8x8xf32>
    %46 = vector.shape_cast %45 : vector<1x1x8x8xf32> to vector<8x8xf32>
    %47 = vector.shape_cast %44 : vector<8x8xf32> to vector<1x1x8x8xf32>
    tpu.vector_store %arg5[%c0_21, %c1, %c0_22, %c0_23], %47 {strides = array<i32>} : memref<1x4x8x8xf32, #tpu.memory_space<vmem>>, vector<1x1x8x8xf32>,
    %cst_24 = arith.constant dense<0.000000e+00> : vector<8x8xf32>
    %48 = tpu.matmul %44, %32, %cst_24 {dimension_numbers = #tpu.dot_dimension_numbers<[1], [0], [0], [1], [0, 0, 1, 1], [], []>} : vector<8x8xf32>, vector<8x8xf32>, vector<8x8xf32> -> vector<8x8xf32>
    %49 = vector.extract_strided_slice %6 {offsets = [0, 16], sizes = [8, 8], strides = [1, 1]} : vector<8x96xf32> to vector<8x8xf32>
    %cst_25 = arith.constant 0.353553385 : f32
    %50 = vector.broadcast %cst_25 : f32 to vector<8x8xf32>
    %51 = arith.mulf %49, %50 : vector<8x8xf32>
    %52 = vector.extract_strided_slice %6 {offsets = [0, 48], sizes = [8, 8], strides = [1, 1]} : vector<8x96xf32> to vector<8x8xf32>
    %53 = vector.extract_strided_slice %6 {offsets = [0, 80], sizes = [8, 8], strides = [1, 1]} : vector<8x96xf32> to vector<8x8xf32>
    %cst_26 = arith.constant dense<0.000000e+00> : vector<8x8xf32>
    %54 = tpu.matmul %51, %52, %cst_26 {dimension_numbers = #tpu.dot_dimension_numbers<[1], [1], [0], [0], [0, 0, 1, 0], [], []>} : vector<8x8xf32>, vector<8x8xf32>, vector<8x8xf32> -> vector<8x8xf32>
    %cst_27 = arith.constant dense<0xFF800000> : vector<8xf32>
    %55 = vector.multi_reduction <maximumf>, %54, %cst_27 [1] : vector<8x8xf32> to vector<8xf32>
    %56 = vector.shape_cast %55 : vector<8xf32> to vector<8x1xf32>
    %57 = vector.broadcast %56 : vector<8x1xf32> to vector<8x8xf32>
    %58 = arith.subf %54, %57 : vector<8x8xf32>
    %59 = math.exp %58 : vector<8x8xf32>
    %cst_28 = arith.constant dense<0.000000e+00> : vector<8xf32>
    %60 = vector.multi_reduction <add>, %59, %cst_28 [1] : vector<8x8xf32> to vector<8xf32>
    %61 = vector.shape_cast %60 : vector<8xf32> to vector<8x1xf32>
    %cst_29 = arith.constant 1.000000e+00 : f32
    %62 = vector.broadcast %cst_29 : f32 to vector<8x1xf32>
    %63 = arith.divf %62, %61 : vector<8x1xf32>
    %64 = vector.broadcast %63 : vector<8x1xf32> to vector<8x8xf32>
    %65 = arith.mulf %59, %64 : vector<8x8xf32>
    %c0_30 = arith.constant 0 : index
    %c2 = arith.constant 2 : index
    %c0_31 = arith.constant 0 : index
    %c0_32 = arith.constant 0 : index
    %66 = vector.load %arg5[%c0_30, %c2, %c0_31, %c0_32] : memref<1x4x8x8xf32, #tpu.memory_space<vmem>>, vector<1x1x8x8xf32>
    %67 = vector.shape_cast %66 : vector<1x1x8x8xf32> to vector<8x8xf32>
    %68 = vector.shape_cast %65 : vector<8x8xf32> to vector<1x1x8x8xf32>
    tpu.vector_store %arg5[%c0_30, %c2, %c0_31, %c0_32], %68 {strides = array<i32>} : memref<1x4x8x8xf32, #tpu.memory_space<vmem>>, vector<1x1x8x8xf32>,
    %cst_33 = arith.constant dense<0.000000e+00> : vector<8x8xf32>
    %69 = tpu.matmul %65, %53, %cst_33 {dimension_numbers = #tpu.dot_dimension_numbers<[1], [0], [0], [1], [0, 0, 1, 1], [], []>} : vector<8x8xf32>, vector<8x8xf32>, vector<8x8xf32> -> vector<8x8xf32>
    %70 = vector.extract_strided_slice %6 {offsets = [0, 24], sizes = [8, 8], strides = [1, 1]} : vector<8x96xf32> to vector<8x8xf32>
    %cst_34 = arith.constant 0.353553385 : f32
    %71 = vector.broadcast %cst_34 : f32 to vector<8x8xf32>
    %72 = arith.mulf %70, %71 : vector<8x8xf32>
    %73 = vector.extract_strided_slice %6 {offsets = [0, 56], sizes = [8, 8], strides = [1, 1]} : vector<8x96xf32> to vector<8x8xf32>
    %74 = vector.extract_strided_slice %6 {offsets = [0, 88], sizes = [8, 8], strides = [1, 1]} : vector<8x96xf32> to vector<8x8xf32>
    %cst_35 = arith.constant dense<0.000000e+00> : vector<8x8xf32>
    %75 = tpu.matmul %72, %73, %cst_35 {dimension_numbers = #tpu.dot_dimension_numbers<[1], [1], [0], [0], [0, 0, 1, 0], [], []>} : vector<8x8xf32>, vector<8x8xf32>, vector<8x8xf32> -> vector<8x8xf32>
    %cst_36 = arith.constant dense<0xFF800000> : vector<8xf32>
    %76 = vector.multi_reduction <maximumf>, %75, %cst_36 [1] : vector<8x8xf32> to vector<8xf32>
    %77 = vector.shape_cast %76 : vector<8xf32> to vector<8x1xf32>
    %78 = vector.broadcast %77 : vector<8x1xf32> to vector<8x8xf32>
    %79 = arith.subf %75, %78 : vector<8x8xf32>
    %80 = math.exp %79 : vector<8x8xf32>
    %cst_37 = arith.constant dense<0.000000e+00> : vector<8xf32>
    %81 = vector.multi_reduction <add>, %80, %cst_37 [1] : vector<8x8xf32> to vector<8xf32>
    %82 = vector.shape_cast %81 : vector<8xf32> to vector<8x1xf32>
    %cst_38 = arith.constant 1.000000e+00 : f32
    %83 = vector.broadcast %cst_38 : f32 to vector<8x1xf32>
    %84 = arith.divf %83, %82 : vector<8x1xf32>
    %85 = vector.broadcast %84 : vector<8x1xf32> to vector<8x8xf32>
    %86 = arith.mulf %80, %85 : vector<8x8xf32>
    %c0_39 = arith.constant 0 : index
    %c3 = arith.constant 3 : index
    %c0_40 = arith.constant 0 : index
    %c0_41 = arith.constant 0 : index
    %87 = vector.load %arg5[%c0_39, %c3, %c0_40, %c0_41] : memref<1x4x8x8xf32, #tpu.memory_space<vmem>>, vector<1x1x8x8xf32>
    %88 = vector.shape_cast %87 : vector<1x1x8x8xf32> to vector<8x8xf32>
    %89 = vector.shape_cast %86 : vector<8x8xf32> to vector<1x1x8x8xf32>
    tpu.vector_store %arg5[%c0_39, %c3, %c0_40, %c0_41], %89 {strides = array<i32>} : memref<1x4x8x8xf32, #tpu.memory_space<vmem>>, vector<1x1x8x8xf32>,
    %cst_42 = arith.constant dense<0.000000e+00> : vector<8x8xf32>
    %90 = tpu.matmul %86, %74, %cst_42 {dimension_numbers = #tpu.dot_dimension_numbers<[1], [0], [0], [1], [0, 0, 1, 1], [], []>} : vector<8x8xf32>, vector<8x8xf32>, vector<8x8xf32> -> vector<8x8xf32>
    %91 = tpu.concatenate %27, %48, %69, %90 in 1 : vector<8x8xf32>, vector<8x8xf32>, vector<8x8xf32>, vector<8x8xf32> -> vector<8x32xf32>
    %c0_43 = arith.constant 0 : index
    %c0_44 = arith.constant 0 : index
    %c0_45 = arith.constant 0 : index
    %92 = vector.load %arg4[%c0_43, %c0_44, %c0_45] : memref<1x8x32xf32, #tpu.memory_space<vmem>>, vector<1x8x32xf32>
    %93 = vector.shape_cast %92 : vector<1x8x32xf32> to vector<8x32xf32>
    %94 = vector.shape_cast %91 : vector<8x32xf32> to vector<1x8x32xf32>
    tpu.vector_store %arg4[%c0_43, %c0_44, %c0_45], %94 {strides = array<i32>} : memref<1x8x32xf32, #tpu.memory_space<vmem>>, vector<1x8x32xf32>,
    return
  }
  func.func @transform_0(%arg0: i32) -> (i32, i32, i32) {
    %c0_i32 = arith.constant 0 : i32
    %c0_i32_0 = arith.constant 0 : i32
    %c0_i32_1 = arith.constant 0 : i32
    return %arg0, %c0_i32, %c0_i32_0 : i32, i32, i32
  }
  func.func @transform_1(%arg0: i32) -> (i32, i32) {
    %c0_i32 = arith.constant 0 : i32
    %c0_i32_0 = arith.constant 0 : i32
    %c0_i32_1 = arith.constant 0 : i32
    return %c0_i32, %c0_i32_0 : i32, i32
  }
  func.func @transform_2(%arg0: i32) -> (i32, i32) {
    %c0_i32 = arith.constant 0 : i32
    %c0_i32_0 = arith.constant 0 : i32
    %c0_i32_1 = arith.constant 0 : i32
    return %c0_i32, %c0_i32_0 : i32, i32
  }
  func.func @transform_3(%arg0: i32) -> (i32, i32, i32) {
    %c0_i32 = arith.constant 0 : i32
    %c0_i32_0 = arith.constant 0 : i32
    %c0_i32_1 = arith.constant 0 : i32
    return %arg0, %c0_i32, %c0_i32_0 : i32, i32, i32
  }
  func.func @transform_4(%arg0: i32) -> (i32, i32, i32, i32) {
    %c0_i32 = arith.constant 0 : i32
    %c0_i32_0 = arith.constant 0 : i32
    %c0_i32_1 = arith.constant 0 : i32
    %c0_i32_2 = arith.constant 0 : i32
    return %arg0, %c0_i32, %c0_i32_0, %c0_i32_1 : i32, i32, i32, i32
  }
}

</mosaic_0001>

<llo_original>
// kernel: tpu_custom_call.1
$region0: #{tpu_custom_call.1}
  #allocation0 [shape = 'u32[]', space=smem, size = 0x4, offset = 0x4, fixed_abs, tag = 'smem constant byte address 0x4 - core index']
  #allocation1 [shape = 'u32[144,128]{1,0:T(1,128)}', space=vmem, size = 0x12000, scoped, tag = 'internal scratch']
  %s0 = inlined_call_operand.hbm [shape: f32[2,8,32], index: 0, kind: input, shape index: {}]
  %s1 = inlined_call_operand.hbm [shape: f32[32,96], index: 1, kind: input, shape index: {}]
  %s2 = inlined_call_operand.vmem [shape: f32[1,96], index: 2, kind: input, shape index: {}]
  %s3 = inlined_call_operand.hbm [shape: f32[2,8,32], index: 3, kind: output, shape index: {0}]
  %s4 = inlined_call_operand.hbm [shape: f32[2,4,8,8], index: 4, kind: output, shape index: {1}]
  %5 = xla_tuple %s3, %s4
  %s6 = sld [smem:[#allocation0]]
  $region61: #{tpu_custom_call.1} parent=0
    _
  %s8 = ssub.s32 1, %s6
  %s9 = scalar_select 0, %s8, %s6
  $region1: #{tpu_custom_call.1} parent=0
    #allocation2 [shape = 'u8[8192]{0}', space=vmem, size = 0x2000, scoped, tag = 'input window, operand 0']
    #allocation3 [shape = 's32[2]{0}', space=sflag, size = 0x8, scoped, tag = 'scoped memory for tpu_custom_call.1']
    #allocation4 [shape = 's32[2]{0}', space=sflag, size = 0x8, scoped, tag = 'scoped memory for tpu_custom_call.1']
    #allocation5 [shape = 'u8[16384]{0}', space=vmem, size = 0x4000, scoped, tag = 'input window, operand 1, single buffered']
    #allocation6 [shape = 's32[1]{0}', space=sflag, size = 0x4, scoped, tag = 'scoped memory for tpu_custom_call.1']
    #allocation7 [shape = 'u8[8192]{0}', space=vmem, size = 0x2000, scoped, tag = 'output window, operand 0']
    #allocation8 [shape = 'u8[32768]{0}', space=vmem, size = 0x8000, scoped, tag = 'output window, operand 1']
    #allocation9 [shape = 's32[2]{0}', space=sflag, size = 0x8, scoped, tag = 'scoped memory for tpu_custom_call.1']
    %10 = vsyncpa [#allocation3], 0
    %s11 = scalar_lea.sflag [#allocation3], 1
    %12 = vsyncpa %s11, 0
    %13 = vsyncpa [#allocation6], 0
    %14 = vsyncpa [#allocation4], 0
    %s15 = scalar_lea.sflag [#allocation4], 1
    %16 = vsyncpa %s15, 0
    %17 = vsyncpa [#allocation9], 0
    %s18 = scalar_lea.sflag [#allocation9], 1
    %19 = vsyncpa %s18, 0
    loop: start=0, step=1, limit=4
    $region2: #{tpu_custom_call.1} parent=1 // loop_pre_header
      _
    $region3: #{tpu_custom_call.1} parent=1 // loop_header
      %s21 = sphi 0, %s25
      %p22 = scmp.ge.s32.totalorder %s21, 4
      %s31 = sphi 0, %s33
      %s34 = sphi 0, %s31
      %s35 = sphi 0, %s34
      %s51 = sphi 0, %s35
      %s55 = sphi 0, %s55
      %s57 = sphi 0, %s55
      %s58 = sphi 0, %s57
      %s72 = sphi 0, %s58
      %s76 = sphi 0, %s76
      %s78 = sphi 0, %s76
      %s79 = sphi 0, %s78
      %s93 = sphi 0, %s79
      %s99 = sphi 0, %s101
      %s102 = sphi 0, %s99
      %s103 = sphi 0, %s102
      %s119 = sphi 0, %s103
      %s125 = sphi 0, %s127
      %s128 = sphi 0, %s125
      %s129 = sphi 0, %s128
      %s145 = sphi 0, %s129
    $region4: #{tpu_custom_call.1} parent=1 // loop_header_branch
      %24 = sbr.rel (%p22) target = $region8
    $region5: #{tpu_custom_call.1} parent=1 // loop_body
      %s26 = ssub.s32 %s21, 1
      %s27 = ssub.s32 %s21, 2
      %s28 = sadd.s32 %s21, 1
      %s29 = ssub.s32 %s21, %s28
      %p30 = scmp.eq.s32.totalorder %s29, 0
      %s32 = sadd.s32 %s31, 1
      %s33 = scalar_select %p30, %s31, %s32
      %p36 = pneg %p30
      %p37 = scmp.eq.s32.totalorder %s21, 1
      %p38 = por %p36, %p37
      %p39 = scmp.ne.s32.totalorder %s31, %s34
      %p40 = scmp.eq.s32.totalorder %s21, 0
      %p41 = por %p39, %p40
      %p42 = scmp.ne.s32.totalorder %s31, %s34
      %p43 = scmp.eq.s32.totalorder %s26, 1
      %p44 = por %p42, %p43
      %p45 = scmp.ne.s32.totalorder %s34, %s35
      %p46 = scmp.eq.s32.totalorder %s26, 0
      %p47 = por %p45, %p46
      %p48 = scmp.ne.s32.totalorder %s34, %s35
      %p49 = scmp.eq.s32.totalorder %s27, 1
      %p50 = por %p48, %p49
      %p52 = scmp.ne.s32.totalorder %s35, %s51
      %p53 = scmp.eq.s32.totalorder %s27, 0
      %p54 = por %p52, %p53
      %s56 = sadd.s32 %s55, 1
      %p59 = scmp.eq.s32.totalorder %s21, 1
      %p60 = scmp.ne.s32.totalorder %s55, %s57
      %p61 = scmp.eq.s32.totalorder %s21, 0
      %p62 = por %p60, %p61
      %p63 = scmp.ne.s32.totalorder %s55, %s57
      %p64 = scmp.eq.s32.totalorder %s26, 1
      %p65 = por %p63, %p64
      %p66 = scmp.ne.s32.totalorder %s57, %s58
      %p67 = scmp.eq.s32.totalorder %s26, 0
      %p68 = por %p66, %p67
      %p69 = scmp.ne.s32.totalorder %s57, %s58
      %p70 = scmp.eq.s32.totalorder %s27, 1
      %p71 = por %p69, %p70
      %p73 = scmp.ne.s32.totalorder %s58, %s72
      %p74 = scmp.eq.s32.totalorder %s27, 0
      %p75 = por %p73, %p74
      %s77 = sadd.s32 %s76, 1
      %p80 = scmp.eq.s32.totalorder %s21, 1
      %p81 = scmp.ne.s32.totalorder %s76, %s78
      %p82 = scmp.eq.s32.totalorder %s21, 0
      %p83 = por %p81, %p82
      %p84 = scmp.ne.s32.totalorder %s76, %s78
      %p85 = scmp.eq.s32.totalorder %s26, 1
      %p86 = por %p84, %p85
      %p87 = scmp.ne.s32.totalorder %s78, %s79
      %p88 = scmp.eq.s32.totalorder %s26, 0
      %p89 = por %p87, %p88
      %p90 = scmp.ne.s32.totalorder %s78, %s79
      %p91 = scmp.eq.s32.totalorder %s27, 1
      %p92 = por %p90, %p91
      %p94 = scmp.ne.s32.totalorder %s79, %s93
      %p95 = scmp.eq.s32.totalorder %s27, 0
      %p96 = por %p94, %p95
      %s97 = ssub.s32 %s21, %s28
      %p98 = scmp.eq.s32.totalorder %s97, 0
      %s100 = sadd.s32 %s99, 1
      %s101 = scalar_select %p98, %s99, %s100
      %p104 = pneg %p98
      %p105 = scmp.eq.s32.totalorder %s21, 1
      %p106 = por %p104, %p105
      %p107 = scmp.ne.s32.totalorder %s99, %s102
      %p108 = scmp.eq.s32.totalorder %s21, 0
      %p109 = por %p107, %p108
      %p110 = scmp.ne.s32.totalorder %s99, %s102
      %p111 = scmp.eq.s32.totalorder %s26, 1
      %p112 = por %p110, %p111
      %p113 = scmp.ne.s32.totalorder %s102, %s103
      %p114 = scmp.eq.s32.totalorder %s26, 0
      %p115 = por %p113, %p114
      %p116 = scmp.ne.s32.totalorder %s102, %s103
      %p117 = scmp.eq.s32.totalorder %s27, 1
      %p118 = por %p116, %p117
      %p120 = scmp.ne.s32.totalorder %s103, %s119
      %p121 = scmp.eq.s32.totalorder %s27, 0
      %p122 = por %p120, %p121
      %s123 = ssub.s32 %s21, %s28
      %p124 = scmp.eq.s32.totalorder %s123, 0
      %s126 = sadd.s32 %s125, 1
      %s127 = scalar_select %p124, %s125, %s126
      %p130 = pneg %p124
      %p131 = scmp.eq.s32.totalorder %s21, 1
      %p132 = por %p130, %p131
      %p133 = scmp.ne.s32.totalorder %s125, %s128
      %p134 = scmp.eq.s32.totalorder %s21, 0
      %p135 = por %p133, %p134
      %p136 = scmp.ne.s32.totalorder %s125, %s128
      %p137 = scmp.eq.s32.totalorder %s26, 1
      %p138 = por %p136, %p137
      %p139 = scmp.ne.s32.totalorder %s128, %s129
      %p140 = scmp.eq.s32.totalorder %s26, 0
      %p141 = por %p139, %p140
      %p142 = scmp.ne.s32.totalorder %s128, %s129
      %p143 = scmp.eq.s32.totalorder %s27, 1
      %p144 = por %p142, %p143
      %p146 = scmp.ne.s32.totalorder %s129, %s145
      %p147 = scmp.eq.s32.totalorder %s27, 0
      %p148 = por %p146, %p147
      %p149 = scmp.le.s32.totalorder 1, %s21
      %p150 = scmp.lt.s32.totalorder %s21, 3
      %p151 = pnand %p149, %p150
      %p152 = pneg %p151
      // Predicated region
      $region9: #{tpu_custom_call.1} parent=5 // pred_check
        _
      $region10: #{tpu_custom_call.1} parent=5 // pred_check_branch
        %154 = sbr.rel (%p151) target = $region12
      $region11: #{tpu_custom_call.1} parent=5 // pred_region
        %s155 = ssub.s32 %s21, 1
        // Predicated region
        $region13: #{tpu_custom_call.1} parent=11 // pred_check
          %p156 = pneg %p68
        $region14: #{tpu_custom_call.1} parent=11 // pred_check_branch
          %158 = sbr.rel (%p156) target = $region16
        $region15: #{tpu_custom_call.1} parent=11 // pred_region
          %s160 = ssub.s32 512, 512
          %161 = vsyncadd [#allocation6], %s160
          %s162 = sshll.u32 [#allocation5], 4
          %s163 = int_to_ptr.vmem [resolvable:$true] %s162
          %168 = dma.hbm_to_vmem [thread:$0]  %s1, 512, %s163, [#allocation6], 128, 128, 8
        $region16: #{tpu_custom_call.1} parent=11 // pred_fallthru
          _
        // Predicated region
        $region17: #{tpu_custom_call.1} parent=11 // pred_check
          %p169 = pneg %p89
        $region18: #{tpu_custom_call.1} parent=11 // pred_check_branch
          %171 = sbr.rel (%p169) target = $region20
        $region19: #{tpu_custom_call.1} parent=11 // pred_region
          _
        $region20: #{tpu_custom_call.1} parent=11 // pred_fallthru
          _
      $region12: #{tpu_custom_call.1} parent=5 // pred_fallthru
        _
      %p172 = scmp.lt.s32.totalorder %s21, 2
      // Predicated region
      $region21: #{tpu_custom_call.1} parent=5 // pred_check
        %p173 = pneg %p172
      $region22: #{tpu_custom_call.1} parent=5 // pred_check_branch
        %175 = sbr.rel (%p173) target = $region24
      $region23: #{tpu_custom_call.1} parent=5 // pred_region
        // Predicated region
        $region25: #{tpu_custom_call.1} parent=23 // pred_check
          %p176 = pneg %p41
        $region26: #{tpu_custom_call.1} parent=23 // pred_check_branch
          %178 = sbr.rel (%p176) target = $region28
        $region27: #{tpu_custom_call.1} parent=23 // pred_region
          %s179 = sand.u32 %s31, 1
          %s180 = scalar_lea.sflag [#allocation3], %s179
          %s181 = sand.u32 %s31, 1
          %s182 = smul.addr %s181, 8
          %s183 = scalar_lea.vmem [#allocation2], %s182
          %s185 = ssub.s32 128, 128
          %186 = vsyncadd %s180, %s185
          %s187 = smul.addr %s21, 128
          %s188 = scalar_lea.hbm %s0, %s187
          %s190 = sshll.u32 %s183, 4
          %s191 = int_to_ptr.vmem [resolvable:$true] %s190
          %193 = dma.hbm_to_vmem [thread:$0]  %s188, 128, %s191, %s180
        $region28: #{tpu_custom_call.1} parent=23 // pred_fallthru
          _
      $region24: #{tpu_custom_call.1} parent=5 // pred_fallthru
        _
      %p194 = scmp.le.s32.totalorder 1, %s21
      %p195 = scmp.lt.s32.totalorder %s21, 3
      %p196 = pnand %p194, %p195
      %p197 = pneg %p196
      // Predicated region
      $region29: #{tpu_custom_call.1} parent=5 // pred_check
        _
      $region30: #{tpu_custom_call.1} parent=5 // pred_check_branch
        %199 = sbr.rel (%p196) target = $region32
      $region31: #{tpu_custom_call.1} parent=5 // pred_region
        %s200 = ssub.s32 %s21, 1
        %s201 = sand.u32 %s34, 1
        %s202 = scalar_lea.sflag [#allocation3], %s201
        %s203 = sand.u32 %s34, 1
        %s204 = smul.addr %s203, 8
        %s205 = scalar_lea.vmem [#allocation2], %s204
        // Predicated region
        $region33: #{tpu_custom_call.1} parent=31 // pred_check
          %p206 = pneg %p47
        $region34: #{tpu_custom_call.1} parent=31 // pred_check_branch
          %208 = sbr.rel (%p206) target = $region36
        $region35: #{tpu_custom_call.1} parent=31 // pred_region
          %209 = dma.done %s202, 128
        $region36: #{tpu_custom_call.1} parent=31 // pred_fallthru
          _
        // Predicated region
        $region37: #{tpu_custom_call.1} parent=31 // pred_check
          %p210 = pneg %p68
        $region38: #{tpu_custom_call.1} parent=31 // pred_check_branch
          %212 = sbr.rel (%p210) target = $region40
        $region39: #{tpu_custom_call.1} parent=31 // pred_region
          %213 = dma.done [#allocation6], 512
        $region40: #{tpu_custom_call.1} parent=31 // pred_fallthru
          _
        %s214 = sand.u32 %s34, 1
        %s215 = scalar_lea.sflag [#allocation3], %s214
        %s216 = sand.u32 %s34, 1
        %s217 = smul.addr %s216, 8
        %s218 = scalar_lea.vmem [#allocation2], %s217
        %p219 = pneg %p47
        %p220 = pneg %p44
        %p221 = pneg %p68
        %p222 = pneg %p65
        %p223 = pneg %p89
        %p224 = pneg %p86
        %p225 = pneg %p115
        %p226 = pneg %p112
        %s227 = sand.u32 %s102, 1
        %s228 = scalar_lea.sflag [#allocation4], %s227
        %s229 = sand.u32 %s102, 1
        %s230 = smul.addr %s229, 8
        %s231 = scalar_lea.vmem [#allocation7], %s230
        %p232 = pneg %p141
        %p233 = pneg %p138
        %s234 = sand.u32 %s128, 1
        %s235 = scalar_lea.sflag [#allocation9], %s234
        %s236 = sand.u32 %s128, 1
        %s237 = smul.addr %s236, 32
        %s238 = scalar_lea.vmem [#allocation8], %s237
        %v239 = vld [vmem:[%s205] sm:$0xff]
        %v240 = vld [vmem:[#allocation5] sm:$0xff]
        %v241 = vld [vmem:[#allocation5 + $0x8] sm:$0xff]
        %v242 = vld [vmem:[#allocation5 + $0x10] sm:$0xff]
        %v243 = vld [vmem:[#allocation5 + $0x18] sm:$0xff]
        %v244 = vld [vmem:[%s2] sm:$0x1]
        %v246 = vlaneseq
        %v247 = vshrl.u32 %v246, 7
        %v248 = vsub.s32 0, %v247
        %v249 = vrot.slane %v244, %v248
        %vm251 = vcmask 261120
        %v253 = vsel %vm251, %v239, 0
        %255 = vmatprep.subr.mxu0 0.0
        %256 = vmatpush1.msra.mxu0 %v240
        %257 = vmatprep.subr.mxu0 0.0
        %258 = vmatpush1.msra.mxu0 %v241
        %259 = vmatprep.subr.mxu0 0.0
        %260 = vmatpush1.msra.mxu0 %v242
        %261 = vmatprep.subr.mxu0 0.0
        %262 = vmatpush1.msra.mxu0 %v243
        %263 = vmatprep.subr.mxu0 0.0
        %264 = vmatpush1.msra.mxu0 0.0
        %265 = vmatprep.subr.mxu0 0.0
        %266 = vmatpush1.msra.mxu0 0.0
        %267 = vmatprep.subr.mxu0 0.0
        %268 = vmatpush1.msra.mxu0 0.0
        %269 = vmatprep.subr.mxu0 0.0
        %270 = vmatpush1.msra.mxu0 0.0
        %271 = vmatprep.subr.mxu0 0.0
        %272 = vmatpush1.msra.mxu0 0.0
        %273 = vmatprep.subr.mxu0 0.0
        %274 = vmatpush1.msra.mxu0 0.0
        %275 = vmatprep.subr.mxu0 0.0
        %276 = vmatpush1.msra.mxu0 0.0
        %277 = vmatprep.subr.mxu0 0.0
        %278 = vmatpush1.msra.mxu0 0.0
        %279 = vmatprep.subr.mxu0 0.0
        %280 = vmatpush1.msra.mxu0 0.0
        %281 = vmatprep.subr.mxu0 0.0
        %282 = vmatpush1.msra.mxu0 0.0
        %283 = vmatprep.subr.mxu0 0.0
        %284 = vmatpush1.msra.mxu0 0.0
        %285 = vmatprep.subr.mxu0 0.0
        %286 = vmatpush1.msra.mxu0 0.0
        %287 = vmatprep.subr.mxu0 0.0
        %288 = vmatpush1.msra.mxu0 0.0
        %289 = vmatprep.subr.mxu0 0.0
        %290 = vmatpush1.msra.mxu0 0.0
        %291 = vmatprep.subr.mxu0 0.0
        %292 = vmatpush1.msra.mxu0 0.0
        %293 = vmatprep.subr.mxu0 0.0
        %294 = vmatpush1.msra.mxu0 0.0
        %295 = vmatprep.subr.mxu0 0.0
        %296 = vmatpush1.msra.mxu0 0.0
        %297 = vmatprep.subr.mxu0 0.0
        %298 = vmatpush1.msra.mxu0 0.0
        %299 = vmatprep.subr.mxu0 0.0
        %300 = vmatpush1.msra.mxu0 0.0
        %301 = vmatprep.subr.mxu0 0.0
        %302 = vmatpush1.msra.mxu0 0.0
        %303 = vmatprep.subr.mxu0 0.0
        %304 = vmatpush1.msra.mxu0 0.0
        %305 = vmatprep.subr.mxu0 0.0
        %306 = vmatpush1.msra.mxu0 0.0
        %307 = vmatprep.subr.mxu0 0.0
        %308 = vmatpush1.msra.mxu0 0.0
        %309 = vmatprep.subr.mxu0 0.0
        %310 = vmatpush1.msra.mxu0 0.0
        %311 = vmatprep.subr.mxu0 0.0
        %312 = vmatpush1.msra.mxu0 0.0
        %313 = vmatprep.subr.mxu0 0.0
        %314 = vmatpush1.msra.mxu0 0.0
        %315 = vmatprep.subr.mxu0 0.0
        %316 = vmatpush1.msra.mxu0 0.0
        %317 = vmatprep.subr.mxu0 0.0
        %318 = vmatpush1.msra.mxu0 0.0
        %319 = vmatprep.mubr.f32.mxu0 0.0
        %320 = vmatmul.mubr.f32.gmra.mrb[0].mxu0 %v253
        %v321 = vpop.f32.mrb[0].mxu0
        %v322 = vadd.f32 %v249, %v321
        %v323 = vpop.f32.mrb[0].mxu0
        %324 = vdwg.mxu0
        %v325 = vmul.f32 %v322, 0.35355338
        %327 = vrot.lane.b32.xlu0 %v322, 96
        %v328 = vpop.permute.xlu0 %327
        %vm329 = vcmask 64512
        %v331 = vsel %vm329, %v325, 0
        %v333 = vsel %vm329, %v328, 0
        %335 = vmatprep.subr.mxu0 0.0
        %336 = vmatpush1.xpose.msra.mxu0 %v333
        %337 = vmatprep.subr.mxu0 0.0
        %338 = vmatpush1.xpose.msra.mxu0 0.0
        %339 = vmatprep.subr.mxu0 0.0
        %340 = vmatpush1.xpose.msra.mxu0 0.0
        %341 = vmatprep.subr.mxu0 0.0
        %342 = vmatpush1.xpose.msra.mxu0 0.0
        %343 = vmatprep.subr.mxu0 0.0
        %344 = vmatpush1.xpose.msra.mxu0 0.0
        %345 = vmatprep.subr.mxu0 0.0
        %346 = vmatpush1.xpose.msra.mxu0 0.0
        %347 = vmatprep.subr.mxu0 0.0
        %348 = vmatpush1.xpose.msra.mxu0 0.0
        %349 = vmatprep.subr.mxu0 0.0
        %350 = vmatpush1.xpose.msra.mxu0 0.0
        %351 = vmatprep.subr.mxu0 0.0
        %352 = vmatpush1.xpose.msra.mxu0 0.0
        %353 = vmatprep.subr.mxu0 0.0
        %354 = vmatpush1.xpose.msra.mxu0 0.0
        %355 = vmatprep.subr.mxu0 0.0
        %356 = vmatpush1.xpose.msra.mxu0 0.0
        %357 = vmatprep.subr.mxu0 0.0
        %358 = vmatpush1.xpose.msra.mxu0 0.0
        %359 = vmatprep.subr.mxu0 0.0
        %360 = vmatpush1.xpose.msra.mxu0 0.0
        %361 = vmatprep.subr.mxu0 0.0
        %362 = vmatpush1.xpose.msra.mxu0 0.0
        %363 = vmatprep.subr.mxu0 0.0
        %364 = vmatpush1.xpose.msra.mxu0 0.0
        %365 = vmatprep.subr.mxu0 0.0
        %366 = vmatpush1.xpose.msra.mxu0 0.0
        %367 = vmatprep.subr.mxu0 0.0
        %368 = vmatpush1.xpose.msra.mxu0 0.0
        %369 = vmatprep.subr.mxu0 0.0
        %370 = vmatpush1.xpose.msra.mxu0 0.0
        %371 = vmatprep.subr.mxu0 0.0
        %372 = vmatpush1.xpose.msra.mxu0 0.0
        %373 = vmatprep.subr.mxu0 0.0
        %374 = vmatpush1.xpose.msra.mxu0 0.0
        %375 = vmatprep.subr.mxu0 0.0
        %376 = vmatpush1.xpose.msra.mxu0 0.0
        %377 = vmatprep.subr.mxu0 0.0
        %378 = vmatpush1.xpose.msra.mxu0 0.0
        %379 = vmatprep.subr.mxu0 0.0
        %380 = vmatpush1.xpose.msra.mxu0 0.0
        %381 = vmatprep.subr.mxu0 0.0
        %382 = vmatpush1.xpose.msra.mxu0 0.0
        %383 = vmatprep.subr.mxu0 0.0
        %384 = vmatpush1.xpose.msra.mxu0 0.0
        %385 = vmatprep.subr.mxu0 0.0
        %386 = vmatpush1.xpose.msra.mxu0 0.0
        %387 = vmatprep.subr.mxu0 0.0
        %388 = vmatpush1.xpose.msra.mxu0 0.0
        %389 = vmatprep.subr.mxu0 0.0
        %390 = vmatpush1.xpose.msra.mxu0 0.0
        %391 = vmatprep.subr.mxu0 0.0
        %392 = vmatpush1.xpose.msra.mxu0 0.0
        %393 = vmatprep.subr.mxu0 0.0
        %394 = vmatpush1.xpose.msra.mxu0 0.0
        %395 = vmatprep.subr.mxu0 0.0
        %396 = vmatpush1.xpose.msra.mxu0 0.0
        %397 = vmatprep.subr.mxu0 0.0
        %398 = vmatpush1.xpose.msra.mxu0 0.0
        %399 = vmatprep.mubr.f32.mxu0 0.0
        %400 = vmatmul.mubr.f32.gmra.mrb[0].mxu0 %v331
        %v401 = vpop.f32.mrb[0].mxu0
        %v402 = vadd.f32 0.0, %v401
        %v403 = vpop.f32.mrb[0].mxu0
        %404 = vdwg.mxu0
        %v405 = vsel %vm329, %v402, -inf
        %406 = vmax.xlane.f32.xlu0 %v405
        %v407 = vpop.xlane.xlu0 %406
        %v408 = vsub.f32 %v402, %v407
        %v409 = vmul.f32 %v408, 1.442695
        %v410 = vpow.pop %v409
        %v411 = vsel %vm329, %v410, 0.0
        %412 = vadd.xlane.f32.xlu0 %v411
        %v413 = vpop.xlane.xlu0 %412
        %v414 = vrcp.pop %v413
        %v415 = vmul.f32 1.0, %v414
        %v416 = vmul.f32 %v410, %v415
        %417 = vst.msk [vmem:[%s238] sm:$0xff] %vm329, %v416
        %418 = vrot.lane.b32.xlu0 %v322, 64
        %v419 = vpop.permute.xlu0 %418
        %v422 = vsel %vm329, %v416, 0
        %424 = vmatprep.subr.mxu0 0.0
        %425 = vmatpush1.msra.mxu0 %v419
        %426 = vmatprep.subr.mxu0 0.0
        %427 = vmatpush1.msra.mxu0 0.0
        %428 = vmatprep.subr.mxu0 0.0
        %429 = vmatpush1.msra.mxu0 0.0
        %430 = vmatprep.subr.mxu0 0.0
        %431 = vmatpush1.msra.mxu0 0.0
        %432 = vmatprep.subr.mxu0 0.0
        %433 = vmatpush1.msra.mxu0 0.0
        %434 = vmatprep.subr.mxu0 0.0
        %435 = vmatpush1.msra.mxu0 0.0
        %436 = vmatprep.subr.mxu0 0.0
        %437 = vmatpush1.msra.mxu0 0.0
        %438 = vmatprep.subr.mxu0 0.0
        %439 = vmatpush1.msra.mxu0 0.0
        %440 = vmatprep.subr.mxu0 0.0
        %441 = vmatpush1.msra.mxu0 0.0
        %442 = vmatprep.subr.mxu0 0.0
        %443 = vmatpush1.msra.mxu0 0.0
        %444 = vmatprep.subr.mxu0 0.0
        %445 = vmatpush1.msra.mxu0 0.0
        %446 = vmatprep.subr.mxu0 0.0
        %447 = vmatpush1.msra.mxu0 0.0
        %448 = vmatprep.subr.mxu0 0.0
        %449 = vmatpush1.msra.mxu0 0.0
        %450 = vmatprep.subr.mxu0 0.0
        %451 = vmatpush1.msra.mxu0 0.0
        %452 = vmatprep.subr.mxu0 0.0
        %453 = vmatpush1.msra.mxu0 0.0
        %454 = vmatprep.subr.mxu0 0.0
        %455 = vmatpush1.msra.mxu0 0.0
        %456 = vmatprep.subr.mxu0 0.0
        %457 = vmatpush1.msra.mxu0 0.0
        %458 = vmatprep.subr.mxu0 0.0
        %459 = vmatpush1.msra.mxu0 0.0
        %460 = vmatprep.subr.mxu0 0.0
        %461 = vmatpush1.msra.mxu0 0.0
        %462 = vmatprep.subr.mxu0 0.0
        %463 = vmatpush1.msra.mxu0 0.0
        %464 = vmatprep.subr.mxu0 0.0
        %465 = vmatpush1.msra.mxu0 0.0
        %466 = vmatprep.subr.mxu0 0.0
        %467 = vmatpush1.msra.mxu0 0.0
        %468 = vmatprep.subr.mxu0 0.0
        %469 = vmatpush1.msra.mxu0 0.0
        %470 = vmatprep.subr.mxu0 0.0
        %471 = vmatpush1.msra.mxu0 0.0
        %472 = vmatprep.subr.mxu0 0.0
        %473 = vmatpush1.msra.mxu0 0.0
        %474 = vmatprep.subr.mxu0 0.0
        %475 = vmatpush1.msra.mxu0 0.0
        %476 = vmatprep.subr.mxu0 0.0
        %477 = vmatpush1.msra.mxu0 0.0
        %478 = vmatprep.subr.mxu0 0.0
        %479 = vmatpush1.msra.mxu0 0.0
        %480 = vmatprep.subr.mxu0 0.0
        %481 = vmatpush1.msra.mxu0 0.0
        %482 = vmatprep.subr.mxu0 0.0
        %483 = vmatpush1.msra.mxu0 0.0
        %484 = vmatprep.subr.mxu0 0.0
        %485 = vmatpush1.msra.mxu0 0.0
        %486 = vmatprep.subr.mxu0 0.0
        %487 = vmatpush1.msra.mxu0 0.0
        %488 = vmatprep.mubr.f32.mxu0 0.0
        %489 = vmatmul.mubr.f32.gmra.mrb[0].mxu0 %v422
        %v490 = vpop.f32.mrb[0].mxu0
        %v491 = vadd.f32 0.0, %v490
        %v492 = vpop.f32.mrb[0].mxu0
        %493 = vdwg.mxu0
        %494 = vrot.lane.b32.xlu0 %v325, 120
        %v495 = vpop.permute.xlu0 %494
        %496 = vrot.lane.b32.xlu0 %v322, 88
        %v497 = vpop.permute.xlu0 %496
        %v498 = vsel %vm329, %v495, 0
        %v500 = vsel %vm329, %v497, 0
        %502 = vmatprep.subr.mxu0 0.0
        %503 = vmatpush1.xpose.msra.mxu0 %v500
        %504 = vmatprep.subr.mxu0 0.0
        %505 = vmatpush1.xpose.msra.mxu0 0.0
        %506 = vmatprep.subr.mxu0 0.0
        %507 = vmatpush1.xpose.msra.mxu0 0.0
        %508 = vmatprep.subr.mxu0 0.0
        %509 = vmatpush1.xpose.msra.mxu0 0.0
        %510 = vmatprep.subr.mxu0 0.0
        %511 = vmatpush1.xpose.msra.mxu0 0.0
        %512 = vmatprep.subr.mxu0 0.0
        %513 = vmatpush1.xpose.msra.mxu0 0.0
        %514 = vmatprep.subr.mxu0 0.0
        %515 = vmatpush1.xpose.msra.mxu0 0.0
        %516 = vmatprep.subr.mxu0 0.0
        %517 = vmatpush1.xpose.msra.mxu0 0.0
        %518 = vmatprep.subr.mxu0 0.0
        %519 = vmatpush1.xpose.msra.mxu0 0.0
        %520 = vmatprep.subr.mxu0 0.0
        %521 = vmatpush1.xpose.msra.mxu0 0.0
        %522 = vmatprep.subr.mxu0 0.0
        %523 = vmatpush1.xpose.msra.mxu0 0.0
        %524 = vmatprep.subr.mxu0 0.0
        %525 = vmatpush1.xpose.msra.mxu0 0.0
        %526 = vmatprep.subr.mxu0 0.0
        %527 = vmatpush1.xpose.msra.mxu0 0.0
        %528 = vmatprep.subr.mxu0 0.0
        %529 = vmatpush1.xpose.msra.mxu0 0.0
        %530 = vmatprep.subr.mxu0 0.0
        %531 = vmatpush1.xpose.msra.mxu0 0.0
        %532 = vmatprep.subr.mxu0 0.0
        %533 = vmatpush1.xpose.msra.mxu0 0.0
        %534 = vmatprep.subr.mxu0 0.0
        %535 = vmatpush1.xpose.msra.mxu0 0.0
        %536 = vmatprep.subr.mxu0 0.0
        %537 = vmatpush1.xpose.msra.mxu0 0.0
        %538 = vmatprep.subr.mxu0 0.0
        %539 = vmatpush1.xpose.msra.mxu0 0.0
        %540 = vmatprep.subr.mxu0 0.0
        %541 = vmatpush1.xpose.msra.mxu0 0.0
        %542 = vmatprep.subr.mxu0 0.0
        %543 = vmatpush1.xpose.msra.mxu0 0.0
        %544 = vmatprep.subr.mxu0 0.0
        %545 = vmatpush1.xpose.msra.mxu0 0.0
        %546 = vmatprep.subr.mxu0 0.0
        %547 = vmatpush1.xpose.msra.mxu0 0.0
        %548 = vmatprep.subr.mxu0 0.0
        %549 = vmatpush1.xpose.msra.mxu0 0.0
        %550 = vmatprep.subr.mxu0 0.0
        %551 = vmatpush1.xpose.msra.mxu0 0.0
        %552 = vmatprep.subr.mxu0 0.0
        %553 = vmatpush1.xpose.msra.mxu0 0.0
        %554 = vmatprep.subr.mxu0 0.0
        %555 = vmatpush1.xpose.msra.mxu0 0.0
        %556 = vmatprep.subr.mxu0 0.0
        %557 = vmatpush1.xpose.msra.mxu0 0.0
        %558 = vmatprep.subr.mxu0 0.0
        %559 = vmatpush1.xpose.msra.mxu0 0.0
        %560 = vmatprep.subr.mxu0 0.0
        %561 = vmatpush1.xpose.msra.mxu0 0.0
        %562 = vmatprep.subr.mxu0 0.0
        %563 = vmatpush1.xpose.msra.mxu0 0.0
        %564 = vmatprep.subr.mxu0 0.0
        %565 = vmatpush1.xpose.msra.mxu0 0.0
        %566 = vmatprep.mubr.f32.mxu0 0.0
        %567 = vmatmul.mubr.f32.gmra.mrb[0].mxu0 %v498
        %v568 = vpop.f32.mrb[0].mxu0
        %v569 = vadd.f32 0.0, %v568
        %v570 = vpop.f32.mrb[0].mxu0
        %571 = vdwg.mxu0
        %v572 = vsel %vm329, %v569, -inf
        %573 = vmax.xlane.f32.xlu0 %v572
        %v574 = vpop.xlane.xlu0 %573
        %v575 = vsub.f32 %v569, %v574
        %v576 = vmul.f32 %v575, 1.442695
        %v577 = vpow.pop %v576
        %v578 = vsel %vm329, %v577, 0.0
        %579 = vadd.xlane.f32.xlu0 %v578
        %v580 = vpop.xlane.xlu0 %579
        %v581 = vrcp.pop %v580
        %v582 = vmul.f32 1.0, %v581
        %v583 = vmul.f32 %v577, %v582
        %s584 = scalar_lea.vmem %s238, 8 [#allocation8]
        %585 = vst.msk [vmem:[%s584] sm:$0xff] %vm329, %v583
        %586 = vrot.lane.b32.xlu0 %v322, 56
        %v587 = vpop.permute.xlu0 %586
        %v590 = vsel %vm329, %v583, 0
        %592 = vmatprep.subr.mxu0 0.0
        %593 = vmatpush1.msra.mxu0 %v587
        %594 = vmatprep.subr.mxu0 0.0
        %595 = vmatpush1.msra.mxu0 0.0
        %596 = vmatprep.subr.mxu0 0.0
        %597 = vmatpush1.msra.mxu0 0.0
        %598 = vmatprep.subr.mxu0 0.0
        %599 = vmatpush1.msra.mxu0 0.0
        %600 = vmatprep.subr.mxu0 0.0
        %601 = vmatpush1.msra.mxu0 0.0
        %602 = vmatprep.subr.mxu0 0.0
        %603 = vmatpush1.msra.mxu0 0.0
        %604 = vmatprep.subr.mxu0 0.0
        %605 = vmatpush1.msra.mxu0 0.0
        %606 = vmatprep.subr.mxu0 0.0
        %607 = vmatpush1.msra.mxu0 0.0
        %608 = vmatprep.subr.mxu0 0.0
        %609 = vmatpush1.msra.mxu0 0.0
        %610 = vmatprep.subr.mxu0 0.0
        %611 = vmatpush1.msra.mxu0 0.0
        %612 = vmatprep.subr.mxu0 0.0
        %613 = vmatpush1.msra.mxu0 0.0
        %614 = vmatprep.subr.mxu0 0.0
        %615 = vmatpush1.msra.mxu0 0.0
        %616 = vmatprep.subr.mxu0 0.0
        %617 = vmatpush1.msra.mxu0 0.0
        %618 = vmatprep.subr.mxu0 0.0
        %619 = vmatpush1.msra.mxu0 0.0
        %620 = vmatprep.subr.mxu0 0.0
        %621 = vmatpush1.msra.mxu0 0.0
        %622 = vmatprep.subr.mxu0 0.0
        %623 = vmatpush1.msra.mxu0 0.0
        %624 = vmatprep.subr.mxu0 0.0
        %625 = vmatpush1.msra.mxu0 0.0
        %626 = vmatprep.subr.mxu0 0.0
        %627 = vmatpush1.msra.mxu0 0.0
        %628 = vmatprep.subr.mxu0 0.0
        %629 = vmatpush1.msra.mxu0 0.0
        %630 = vmatprep.subr.mxu0 0.0
        %631 = vmatpush1.msra.mxu0 0.0
        %632 = vmatprep.subr.mxu0 0.0
        %633 = vmatpush1.msra.mxu0 0.0
        %634 = vmatprep.subr.mxu0 0.0
        %635 = vmatpush1.msra.mxu0 0.0
        %636 = vmatprep.subr.mxu0 0.0
        %637 = vmatpush1.msra.mxu0 0.0
        %638 = vmatprep.subr.mxu0 0.0
        %639 = vmatpush1.msra.mxu0 0.0
        %640 = vmatprep.subr.mxu0 0.0
        %641 = vmatpush1.msra.mxu0 0.0
        %642 = vmatprep.subr.mxu0 0.0
        %643 = vmatpush1.msra.mxu0 0.0
        %644 = vmatprep.subr.mxu0 0.0
        %645 = vmatpush1.msra.mxu0 0.0
        %646 = vmatprep.subr.mxu0 0.0
        %647 = vmatpush1.msra.mxu0 0.0
        %648 = vmatprep.subr.mxu0 0.0
        %649 = vmatpush1.msra.mxu0 0.0
        %650 = vmatprep.subr.mxu0 0.0
        %651 = vmatpush1.msra.mxu0 0.0
        %652 = vmatprep.subr.mxu0 0.0
        %653 = vmatpush1.msra.mxu0 0.0
        %654 = vmatprep.subr.mxu0 0.0
        %655 = vmatpush1.msra.mxu0 0.0
        %656 = vmatprep.mubr.f32.mxu0 0.0
        %657 = vmatmul.mubr.f32.gmra.mrb[0].mxu0 %v590
        %v658 = vpop.f32.mrb[0].mxu0
        %v659 = vadd.f32 0.0, %v658
        %v660 = vpop.f32.mrb[0].mxu0
        %661 = vdwg.mxu0
        %662 = vrot.lane.b32.xlu0 %v325, 112
        %v663 = vpop.permute.xlu0 %662
        %664 = vrot.lane.b32.xlu0 %v322, 80
        %v665 = vpop.permute.xlu0 %664
        %v666 = vsel %vm329, %v663, 0
        %v668 = vsel %vm329, %v665, 0
        %670 = vmatprep.subr.mxu0 0.0
        %671 = vmatpush1.xpose.msra.mxu0 %v668
        %672 = vmatprep.subr.mxu0 0.0
        %673 = vmatpush1.xpose.msra.mxu0 0.0
        %674 = vmatprep.subr.mxu0 0.0
        %675 = vmatpush1.xpose.msra.mxu0 0.0
        %676 = vmatprep.subr.mxu0 0.0
        %677 = vmatpush1.xpose.msra.mxu0 0.0
        %678 = vmatprep.subr.mxu0 0.0
        %679 = vmatpush1.xpose.msra.mxu0 0.0
        %680 = vmatprep.subr.mxu0 0.0
        %681 = vmatpush1.xpose.msra.mxu0 0.0
        %682 = vmatprep.subr.mxu0 0.0
        %683 = vmatpush1.xpose.msra.mxu0 0.0
        %684 = vmatprep.subr.mxu0 0.0
        %685 = vmatpush1.xpose.msra.mxu0 0.0
        %686 = vmatprep.subr.mxu0 0.0
        %687 = vmatpush1.xpose.msra.mxu0 0.0
        %688 = vmatprep.subr.mxu0 0.0
        %689 = vmatpush1.xpose.msra.mxu0 0.0
        %690 = vmatprep.subr.mxu0 0.0
        %691 = vmatpush1.xpose.msra.mxu0 0.0
        %692 = vmatprep.subr.mxu0 0.0
        %693 = vmatpush1.xpose.msra.mxu0 0.0
        %694 = vmatprep.subr.mxu0 0.0
        %695 = vmatpush1.xpose.msra.mxu0 0.0
        %696 = vmatprep.subr.mxu0 0.0
        %697 = vmatpush1.xpose.msra.mxu0 0.0
        %698 = vmatprep.subr.mxu0 0.0
        %699 = vmatpush1.xpose.msra.mxu0 0.0
        %700 = vmatprep.subr.mxu0 0.0
        %701 = vmatpush1.xpose.msra.mxu0 0.0
        %702 = vmatprep.subr.mxu0 0.0
        %703 = vmatpush1.xpose.msra.mxu0 0.0
        %704 = vmatprep.subr.mxu0 0.0
        %705 = vmatpush1.xpose.msra.mxu0 0.0
        %706 = vmatprep.subr.mxu0 0.0
        %707 = vmatpush1.xpose.msra.mxu0 0.0
        %708 = vmatprep.subr.mxu0 0.0
        %709 = vmatpush1.xpose.msra.mxu0 0.0
        %710 = vmatprep.subr.mxu0 0.0
        %711 = vmatpush1.xpose.msra.mxu0 0.0
        %712 = vmatprep.subr.mxu0 0.0
        %713 = vmatpush1.xpose.msra.mxu0 0.0
        %714 = vmatprep.subr.mxu0 0.0
        %715 = vmatpush1.xpose.msra.mxu0 0.0
        %716 = vmatprep.subr.mxu0 0.0
        %717 = vmatpush1.xpose.msra.mxu0 0.0
        %718 = vmatprep.subr.mxu0 0.0
        %719 = vmatpush1.xpose.msra.mxu0 0.0
        %720 = vmatprep.subr.mxu0 0.0
        %721 = vmatpush1.xpose.msra.mxu0 0.0
        %722 = vmatprep.subr.mxu0 0.0
        %723 = vmatpush1.xpose.msra.mxu0 0.0
        %724 = vmatprep.subr.mxu0 0.0
        %725 = vmatpush1.xpose.msra.mxu0 0.0
        %726 = vmatprep.subr.mxu0 0.0
        %727 = vmatpush1.xpose.msra.mxu0 0.0
        %728 = vmatprep.subr.mxu0 0.0
        %729 = vmatpush1.xpose.msra.mxu0 0.0
        %730 = vmatprep.subr.mxu0 0.0
        %731 = vmatpush1.xpose.msra.mxu0 0.0
        %732 = vmatprep.subr.mxu0 0.0
        %733 = vmatpush1.xpose.msra.mxu0 0.0
        %734 = vmatprep.mubr.f32.mxu0 0.0
        %735 = vmatmul.mubr.f32.gmra.mrb[0].mxu0 %v666
        %v736 = vpop.f32.mrb[0].mxu0
        %v737 = vadd.f32 0.0, %v736
        %v738 = vpop.f32.mrb[0].mxu0
        %739 = vdwg.mxu0
        %v740 = vsel %vm329, %v737, -inf
        %741 = vmax.xlane.f32.xlu0 %v740
        %v742 = vpop.xlane.xlu0 %741
        %v743 = vsub.f32 %v737, %v742
        %v744 = vmul.f32 %v743, 1.442695
        %v745 = vpow.pop %v744
        %v746 = vsel %vm329, %v745, 0.0
        %747 = vadd.xlane.f32.xlu0 %v746
        %v748 = vpop.xlane.xlu0 %747
        %v749 = vrcp.pop %v748
        %v750 = vmul.f32 1.0, %v749
        %v751 = vmul.f32 %v745, %v750
        %s752 = scalar_lea.vmem %s238, 16 [#allocation8]
        %753 = vst.msk [vmem:[%s752] sm:$0xff] %vm329, %v751
        %754 = vrot.lane.b32.xlu0 %v322, 48
        %v755 = vpop.permute.xlu0 %754
        %v758 = vsel %vm329, %v751, 0
        %760 = vmatprep.subr.mxu0 0.0
        %761 = vmatpush1.msra.mxu0 %v755
        %762 = vmatprep.subr.mxu0 0.0
        %763 = vmatpush1.msra.mxu0 0.0
        %764 = vmatprep.subr.mxu0 0.0
        %765 = vmatpush1.msra.mxu0 0.0
        %766 = vmatprep.subr.mxu0 0.0
        %767 = vmatpush1.msra.mxu0 0.0
        %768 = vmatprep.subr.mxu0 0.0
        %769 = vmatpush1.msra.mxu0 0.0
        %770 = vmatprep.subr.mxu0 0.0
        %771 = vmatpush1.msra.mxu0 0.0
        %772 = vmatprep.subr.mxu0 0.0
        %773 = vmatpush1.msra.mxu0 0.0
        %774 = vmatprep.subr.mxu0 0.0
        %775 = vmatpush1.msra.mxu0 0.0
        %776 = vmatprep.subr.mxu0 0.0
        %777 = vmatpush1.msra.mxu0 0.0
        %778 = vmatprep.subr.mxu0 0.0
        %779 = vmatpush1.msra.mxu0 0.0
        %780 = vmatprep.subr.mxu0 0.0
        %781 = vmatpush1.msra.mxu0 0.0
        %782 = vmatprep.subr.mxu0 0.0
        %783 = vmatpush1.msra.mxu0 0.0
        %784 = vmatprep.subr.mxu0 0.0
        %785 = vmatpush1.msra.mxu0 0.0
        %786 = vmatprep.subr.mxu0 0.0
        %787 = vmatpush1.msra.mxu0 0.0
        %788 = vmatprep.subr.mxu0 0.0
        %789 = vmatpush1.msra.mxu0 0.0
        %790 = vmatprep.subr.mxu0 0.0
        %791 = vmatpush1.msra.mxu0 0.0
        %792 = vmatprep.subr.mxu0 0.0
        %793 = vmatpush1.msra.mxu0 0.0
        %794 = vmatprep.subr.mxu0 0.0
        %795 = vmatpush1.msra.mxu0 0.0
        %796 = vmatprep.subr.mxu0 0.0
        %797 = vmatpush1.msra.mxu0 0.0
        %798 = vmatprep.subr.mxu0 0.0
        %799 = vmatpush1.msra.mxu0 0.0
        %800 = vmatprep.subr.mxu0 0.0
        %801 = vmatpush1.msra.mxu0 0.0
        %802 = vmatprep.subr.mxu0 0.0
        %803 = vmatpush1.msra.mxu0 0.0
        %804 = vmatprep.subr.mxu0 0.0
        %805 = vmatpush1.msra.mxu0 0.0
        %806 = vmatprep.subr.mxu0 0.0
        %807 = vmatpush1.msra.mxu0 0.0
        %808 = vmatprep.subr.mxu0 0.0
        %809 = vmatpush1.msra.mxu0 0.0
        %810 = vmatprep.subr.mxu0 0.0
        %811 = vmatpush1.msra.mxu0 0.0
        %812 = vmatprep.subr.mxu0 0.0
        %813 = vmatpush1.msra.mxu0 0.0
        %814 = vmatprep.subr.mxu0 0.0
        %815 = vmatpush1.msra.mxu0 0.0
        %816 = vmatprep.subr.mxu0 0.0
        %817 = vmatpush1.msra.mxu0 0.0
        %818 = vmatprep.subr.mxu0 0.0
        %819 = vmatpush1.msra.mxu0 0.0
        %820 = vmatprep.subr.mxu0 0.0
        %821 = vmatpush1.msra.mxu0 0.0
        %822 = vmatprep.subr.mxu0 0.0
        %823 = vmatpush1.msra.mxu0 0.0
        %824 = vmatprep.mubr.f32.mxu0 0.0
        %825 = vmatmul.mubr.f32.gmra.mrb[0].mxu0 %v758
        %v826 = vpop.f32.mrb[0].mxu0
        %v827 = vadd.f32 0.0, %v826
        %v828 = vpop.f32.mrb[0].mxu0
        %829 = vdwg.mxu0
        %830 = vrot.lane.b32.xlu0 %v325, 104
        %v831 = vpop.permute.xlu0 %830
        %832 = vrot.lane.b32.xlu0 %v322, 72
        %v833 = vpop.permute.xlu0 %832
        %v834 = vsel %vm329, %v831, 0
        %v836 = vsel %vm329, %v833, 0
        %838 = vmatprep.subr.mxu0 0.0
        %839 = vmatpush1.xpose.msra.mxu0 %v836
        %840 = vmatprep.subr.mxu0 0.0
        %841 = vmatpush1.xpose.msra.mxu0 0.0
        %842 = vmatprep.subr.mxu0 0.0
        %843 = vmatpush1.xpose.msra.mxu0 0.0
        %844 = vmatprep.subr.mxu0 0.0
        %845 = vmatpush1.xpose.msra.mxu0 0.0
        %846 = vmatprep.subr.mxu0 0.0
        %847 = vmatpush1.xpose.msra.mxu0 0.0
        %848 = vmatprep.subr.mxu0 0.0
        %849 = vmatpush1.xpose.msra.mxu0 0.0
        %850 = vmatprep.subr.mxu0 0.0
        %851 = vmatpush1.xpose.msra.mxu0 0.0
        %852 = vmatprep.subr.mxu0 0.0
        %853 = vmatpush1.xpose.msra.mxu0 0.0
        %854 = vmatprep.subr.mxu0 0.0
        %855 = vmatpush1.xpose.msra.mxu0 0.0
        %856 = vmatprep.subr.mxu0 0.0
        %857 = vmatpush1.xpose.msra.mxu0 0.0
        %858 = vmatprep.subr.mxu0 0.0
        %859 = vmatpush1.xpose.msra.mxu0 0.0
        %860 = vmatprep.subr.mxu0 0.0
        %861 = vmatpush1.xpose.msra.mxu0 0.0
        %862 = vmatprep.subr.mxu0 0.0
        %863 = vmatpush1.xpose.msra.mxu0 0.0
        %864 = vmatprep.subr.mxu0 0.0
        %865 = vmatpush1.xpose.msra.mxu0 0.0
        %866 = vmatprep.subr.mxu0 0.0
        %867 = vmatpush1.xpose.msra.mxu0 0.0
        %868 = vmatprep.subr.mxu0 0.0
        %869 = vmatpush1.xpose.msra.mxu0 0.0
        %870 = vmatprep.subr.mxu0 0.0
        %871 = vmatpush1.xpose.msra.mxu0 0.0
        %872 = vmatprep.subr.mxu0 0.0
        %873 = vmatpush1.xpose.msra.mxu0 0.0
        %874 = vmatprep.subr.mxu0 0.0
        %875 = vmatpush1.xpose.msra.mxu0 0.0
        %876 = vmatprep.subr.mxu0 0.0
        %877 = vmatpush1.xpose.msra.mxu0 0.0
        %878 = vmatprep.subr.mxu0 0.0
        %879 = vmatpush1.xpose.msra.mxu0 0.0
        %880 = vmatprep.subr.mxu0 0.0
        %881 = vmatpush1.xpose.msra.mxu0 0.0
        %882 = vmatprep.subr.mxu0 0.0
        %883 = vmatpush1.xpose.msra.mxu0 0.0
        %884 = vmatprep.subr.mxu0 0.0
        %885 = vmatpush1.xpose.msra.mxu0 0.0
        %886 = vmatprep.subr.mxu0 0.0
        %887 = vmatpush1.xpose.msra.mxu0 0.0
        %888 = vmatprep.subr.mxu0 0.0
        %889 = vmatpush1.xpose.msra.mxu0 0.0
        %890 = vmatprep.subr.mxu0 0.0
        %891 = vmatpush1.xpose.msra.mxu0 0.0
        %892 = vmatprep.subr.mxu0 0.0
        %893 = vmatpush1.xpose.msra.mxu0 0.0
        %894 = vmatprep.subr.mxu0 0.0
        %895 = vmatpush1.xpose.msra.mxu0 0.0
        %896 = vmatprep.subr.mxu0 0.0
        %897 = vmatpush1.xpose.msra.mxu0 0.0
        %898 = vmatprep.subr.mxu0 0.0
        %899 = vmatpush1.xpose.msra.mxu0 0.0
        %900 = vmatprep.subr.mxu0 0.0
        %901 = vmatpush1.xpose.msra.mxu0 0.0
        %902 = vmatprep.mubr.f32.mxu0 0.0
        %903 = vmatmul.mubr.f32.gmra.mrb[0].mxu0 %v834
        %v904 = vpop.f32.mrb[0].mxu0
        %v905 = vadd.f32 0.0, %v904
        %v906 = vpop.f32.mrb[0].mxu0
        %907 = vdwg.mxu0
        %v908 = vsel %vm329, %v905, -inf
        %909 = vmax.xlane.f32.xlu0 %v908
        %v910 = vpop.xlane.xlu0 %909
        %v911 = vsub.f32 %v905, %v910
        %v912 = vmul.f32 %v911, 1.442695
        %v913 = vpow.pop %v912
        %v914 = vsel %vm329, %v913, 0.0
        %915 = vadd.xlane.f32.xlu0 %v914
        %v916 = vpop.xlane.xlu0 %915
        %v917 = vrcp.pop %v916
        %v918 = vmul.f32 1.0, %v917
        %v919 = vmul.f32 %v913, %v918
        %s920 = scalar_lea.vmem %s238, 24 [#allocation8]
        %921 = vst.msk [vmem:[%s920] sm:$0xff] %vm329, %v919
        %922 = vrot.lane.b32.xlu0 %v322, 40
        %v923 = vpop.permute.xlu0 %922
        %v926 = vsel %vm329, %v919, 0
        %928 = vmatprep.subr.mxu0 0.0
        %929 = vmatpush1.msra.mxu0 %v923
        %930 = vmatprep.subr.mxu0 0.0
        %931 = vmatpush1.msra.mxu0 0.0
        %932 = vmatprep.subr.mxu0 0.0
        %933 = vmatpush1.msra.mxu0 0.0
        %934 = vmatprep.subr.mxu0 0.0
        %935 = vmatpush1.msra.mxu0 0.0
        %936 = vmatprep.subr.mxu0 0.0
        %937 = vmatpush1.msra.mxu0 0.0
        %938 = vmatprep.subr.mxu0 0.0
        %939 = vmatpush1.msra.mxu0 0.0
        %940 = vmatprep.subr.mxu0 0.0
        %941 = vmatpush1.msra.mxu0 0.0
        %942 = vmatprep.subr.mxu0 0.0
        %943 = vmatpush1.msra.mxu0 0.0
        %944 = vmatprep.subr.mxu0 0.0
        %945 = vmatpush1.msra.mxu0 0.0
        %946 = vmatprep.subr.mxu0 0.0
        %947 = vmatpush1.msra.mxu0 0.0
        %948 = vmatprep.subr.mxu0 0.0
        %949 = vmatpush1.msra.mxu0 0.0
        %950 = vmatprep.subr.mxu0 0.0
        %951 = vmatpush1.msra.mxu0 0.0
        %952 = vmatprep.subr.mxu0 0.0
        %953 = vmatpush1.msra.mxu0 0.0
        %954 = vmatprep.subr.mxu0 0.0
        %955 = vmatpush1.msra.mxu0 0.0
        %956 = vmatprep.subr.mxu0 0.0
        %957 = vmatpush1.msra.mxu0 0.0
        %958 = vmatprep.subr.mxu0 0.0
        %959 = vmatpush1.msra.mxu0 0.0
        %960 = vmatprep.subr.mxu0 0.0
        %961 = vmatpush1.msra.mxu0 0.0
        %962 = vmatprep.subr.mxu0 0.0
        %963 = vmatpush1.msra.mxu0 0.0
        %964 = vmatprep.subr.mxu0 0.0
        %965 = vmatpush1.msra.mxu0 0.0
        %966 = vmatprep.subr.mxu0 0.0
        %967 = vmatpush1.msra.mxu0 0.0
        %968 = vmatprep.subr.mxu0 0.0
        %969 = vmatpush1.msra.mxu0 0.0
        %970 = vmatprep.subr.mxu0 0.0
        %971 = vmatpush1.msra.mxu0 0.0
        %972 = vmatprep.subr.mxu0 0.0
        %973 = vmatpush1.msra.mxu0 0.0
        %974 = vmatprep.subr.mxu0 0.0
        %975 = vmatpush1.msra.mxu0 0.0
        %976 = vmatprep.subr.mxu0 0.0
        %977 = vmatpush1.msra.mxu0 0.0
        %978 = vmatprep.subr.mxu0 0.0
        %979 = vmatpush1.msra.mxu0 0.0
        %980 = vmatprep.subr.mxu0 0.0
        %981 = vmatpush1.msra.mxu0 0.0
        %982 = vmatprep.subr.mxu0 0.0
        %983 = vmatpush1.msra.mxu0 0.0
        %984 = vmatprep.subr.mxu0 0.0
        %985 = vmatpush1.msra.mxu0 0.0
        %986 = vmatprep.subr.mxu0 0.0
        %987 = vmatpush1.msra.mxu0 0.0
        %988 = vmatprep.subr.mxu0 0.0
        %989 = vmatpush1.msra.mxu0 0.0
        %990 = vmatprep.subr.mxu0 0.0
        %991 = vmatpush1.msra.mxu0 0.0
        %992 = vmatprep.mubr.f32.mxu0 0.0
        %993 = vmatmul.mubr.f32.gmra.mrb[0].mxu0 %v926
        %v994 = vpop.f32.mrb[0].mxu0
        %v995 = vadd.f32 0.0, %v994
        %v996 = vpop.f32.mrb[0].mxu0
        %997 = vdwg.mxu0
        %999 = vrot.lane.b32.xlu0 %v659, 8
        %v1000 = vpop.permute.xlu0 %999
        %1003 = vrot.lane.b32.xlu0 %v827, 16
        %v1004 = vpop.permute.xlu0 %1003
        %1007 = vrot.lane.b32.xlu0 %v995, 24
        %v1008 = vpop.permute.xlu0 %1007
        %v1010 = vsel %vm329, %v491, %v1000
        %vm1011 = vcmask 130048
        %v1012 = vsel %vm1011, %v1010, %v1004
        %vm1013 = vcmask 195584
        %v1014 = vsel %vm1013, %v1012, %v1008
        %1015 = vst.msk [vmem:[%s231] sm:$0xff] %vm251, %v1014
        %s1016 = sand.u32 %s102, 1
        %s1017 = scalar_lea.sflag [#allocation4], %s1016
        %s1018 = sand.u32 %s102, 1
        %s1019 = smul.addr %s1018, 8
        %s1020 = scalar_lea.vmem [#allocation7], %s1019
        %s1021 = sand.u32 %s128, 1
        %s1022 = scalar_lea.sflag [#allocation9], %s1021
        %s1023 = sand.u32 %s128, 1
        %s1024 = smul.addr %s1023, 32
        %s1025 = scalar_lea.vmem [#allocation8], %s1024
        // Predicated region
        $region41: #{tpu_custom_call.1} parent=31 // pred_check
          %p1026 = pneg %p112
        $region42: #{tpu_custom_call.1} parent=31 // pred_check_branch
          %1028 = sbr.rel (%p1026) target = $region44
        $region43: #{tpu_custom_call.1} parent=31 // pred_region
          %s1030 = ssub.s32 128, 128
          %1031 = vsyncadd %s1017, %s1030
          %s1032 = smul.addr %s26, 128
          %s1033 = scalar_lea.hbm %s3, %s1032
          %s1035 = sshll.u32 %s1020, 4
          %s1036 = int_to_ptr.vmem [resolvable:$true] %s1035
          %1038 = dma.vmem_to_hbm [thread:$0]  %s1036, 128, %s1033, %s1017
        $region44: #{tpu_custom_call.1} parent=31 // pred_fallthru
          _
        // Predicated region
        $region45: #{tpu_custom_call.1} parent=31 // pred_check
          %p1039 = pneg %p138
        $region46: #{tpu_custom_call.1} parent=31 // pred_check_branch
          %1041 = sbr.rel (%p1039) target = $region48
        $region47: #{tpu_custom_call.1} parent=31 // pred_region
          %s1043 = ssub.s32 512, 512
          %1044 = vsyncadd %s1022, %s1043
          %s1045 = smul.addr %s26, 4
          %s1046 = smul.addr %s1045, 128
          %s1047 = scalar_lea.hbm %s4, %s1046
          %s1048 = sshll.u32 %s1025, 4
          %s1049 = int_to_ptr.vmem [resolvable:$true] %s1048
          %1054 = dma.vmem_to_hbm [thread:$0]  %s1049, 512, %s1047, %s1022, 128, 128, 8
        $region48: #{tpu_custom_call.1} parent=31 // pred_fallthru
          _
      $region32: #{tpu_custom_call.1} parent=5 // pred_fallthru
        _
      %p1055 = scmp.le.s32.totalorder 2, %s21
      // Predicated region
      $region49: #{tpu_custom_call.1} parent=5 // pred_check
        %p1056 = pneg %p1055
      $region50: #{tpu_custom_call.1} parent=5 // pred_check_branch
        %1058 = sbr.rel (%p1056) target = $region52
      $region51: #{tpu_custom_call.1} parent=5 // pred_region
        %s1059 = ssub.s32 %s21, 2
        // Predicated region
        $region53: #{tpu_custom_call.1} parent=51 // pred_check
          %p1060 = pneg %p118
        $region54: #{tpu_custom_call.1} parent=51 // pred_check_branch
          %1062 = sbr.rel (%p1060) target = $region56
        $region55: #{tpu_custom_call.1} parent=51 // pred_region
          %s1063 = sand.u32 %s103, 1
          %s1064 = scalar_lea.sflag [#allocation4], %s1063
          %s1065 = sand.u32 %s103, 1
          %s1066 = smul.addr %s1065, 8
          %s1067 = scalar_lea.vmem [#allocation7], %s1066
          %1068 = dma.done %s1064, 128
        $region56: #{tpu_custom_call.1} parent=51 // pred_fallthru
          _
        // Predicated region
        $region57: #{tpu_custom_call.1} parent=51 // pred_check
          %p1069 = pneg %p144
        $region58: #{tpu_custom_call.1} parent=51 // pred_check_branch
          %1071 = sbr.rel (%p1069) target = $region60
        $region59: #{tpu_custom_call.1} parent=51 // pred_region
          %s1072 = sand.u32 %s129, 1
          %s1073 = scalar_lea.sflag [#allocation9], %s1072
          %s1074 = sand.u32 %s129, 1
          %s1075 = smul.addr %s1074, 32
          %s1076 = scalar_lea.vmem [#allocation8], %s1075
          %1077 = dma.done %s1073, 512
        $region60: #{tpu_custom_call.1} parent=51 // pred_fallthru
          _
      $region52: #{tpu_custom_call.1} parent=5 // pred_fallthru
        _
    $region6: #{tpu_custom_call.1} parent=1 // loop_footer
      %s25 = sadd.s32 1, %s21
    $region7: #{tpu_custom_call.1} parent=1 // loop_footer_branch
      %20 = sbr.rel target = $region3
    $region8: #{tpu_custom_call.1} parent=1 // loop_exit
      _
    %1078 = vsyncpa [#allocation3], 1
    %s1079 = scalar_lea.sflag [#allocation3], 1
    %1080 = vsyncpa %s1079, 1
    %1081 = vsyncpa [#allocation6], 1
    %1082 = vsyncpa [#allocation4], 1
    %s1083 = scalar_lea.sflag [#allocation4], 1
    %1084 = vsyncpa %s1083, 1
    %1085 = vsyncpa [#allocation9], 1
    %s1086 = scalar_lea.sflag [#allocation9], 1
    %1087 = vsyncpa %s1086, 1

</llo_original>
